<compile_context>
chip_gen: v5e
topology: v5e:2x2
jax: 0.10.0
libtpu: 0.0.40
codegen_flags: <defaults>
</compile_context>

<pallas_src>
import functools

import jax
import jax.numpy as jnp
from jax.experimental import pallas as pl
from jax.experimental.pallas import tpu as pltpu


def _triplet_loss_kernel(pos_ref, neg_ref, out_ref,
                         logpos_acc, logneg_acc, relu_acc,
                         *, inv_pos_count, inv_neg_count):
    step = pl.program_id(0)

    @pl.when(step == 0)
    def _init():
        logpos_acc[...] = jnp.zeros_like(logpos_acc)
        logneg_acc[...] = jnp.zeros_like(logneg_acc)
        relu_acc[...] = jnp.zeros_like(relu_acc)

    # Upcast in-kernel: bf16 inputs stream at half the HBM bytes, math in f32.
    pos = pos_ref[...].astype(jnp.float32)      # (TQ, P)
    neg = neg_ref[...].astype(jnp.float32)      # (TQ, N)

    # Row max needs the whole patch axis -> only the Q axis is tiled.
    d_plus_max = jnp.max(pos, axis=-1, keepdims=True)            # (TQ, 1)

    # Lane-preserving partial sums: reduce only the Q (sublane) axis here;
    # the single cross-lane reduce happens once in the epilogue.
    relu_acc[...] += jnp.sum(jnp.maximum(d_plus_max - neg, 0.0),
                             axis=0, keepdims=True)               # (1, N)
    # NOTE: similarities are guaranteed in (0, 1) upstream, so log(1 - pos)
    # and log(neg) are finite (matches the PyTorch reference: log(1 - x)).
    logpos_acc[...] += jnp.sum(jnp.log(1.0 - pos), axis=0, keepdims=True)
    logneg_acc[...] += jnp.sum(jnp.log(neg), axis=0, keepdims=True)

    @pl.when(step == pl.num_programs(0) - 1)
    def _finalize():
        psi = jnp.sum(relu_acc[...]) * inv_neg_count
        phi = -(jnp.sum(logpos_acc[...]) * inv_pos_count
                + jnp.sum(logneg_acc[...]) * inv_neg_count)
        out_ref[0, 0] = phi + psi


def triplet_loss(pos_patch_sims, neg_patch_sims, query_size, *, tq=None):
    # Same view semantics as the PyTorch module (.view(query_size, -1)).
    pos = pos_patch_sims.reshape(query_size, -1)
    neg = neg_patch_sims.reshape(query_size, -1)
    q, p = pos.shape
    _, n = neg.shape

    # Means are over the *true* element counts; padded rows contribute zero.
    inv_pos_count = 1.0 / float(q * p)
    inv_neg_count = 1.0 / float(q * n)

    itemsize = jnp.dtype(pos.dtype).itemsize
    if tq is None:
        # Biggest Q-tile (multiple of 8, <=1024 rows) such that
        # 2 inputs x 2 pipeline buffers stay within ~16 MiB of VMEM.
        budget = 16 * 1024 * 1024
        tq = budget // max(1, 2 * (p + n) * itemsize)
        tq = max(8, min(1024, (tq // 8) * 8))
    q_rounded = -(-q // 8) * 8
    tq = max(8, (min(tq, q_rounded) // 8) * 8)
    q_pad = -(-q // tq) * tq

    if q_pad != q:
        pad = q_pad - q
        # Padded pos rows = 0 -> log(1-0)=0 and row max = 0.
        # Padded neg rows = 1 -> log(1)=0 and relu(0 - 1)=0.
        pos = jnp.pad(pos, ((0, pad), (0, 0)), constant_values=0.0)
        neg = jnp.pad(neg, ((0, pad), (0, 0)), constant_values=1.0)

    kernel = functools.partial(_triplet_loss_kernel,
                               inv_pos_count=inv_pos_count,
                               inv_neg_count=inv_neg_count)

    out = pl.pallas_call(
        kernel,
        out_shape=jax.ShapeDtypeStruct((1, 1), jnp.float32),
        grid=(q_pad // tq,),
        in_specs=[
            pl.BlockSpec((tq, p), lambda i: (i, 0)),
            pl.BlockSpec((tq, n), lambda i: (i, 0)),
        ],
        # Scalar result in SMEM, written once in the epilogue.
        out_specs=pl.BlockSpec(memory_space=pltpu.MemorySpace.SMEM),
        scratch_shapes=[
            pltpu.VMEM((1, p), jnp.float32),   # running sum of log(1 - pos)
            pltpu.VMEM((1, n), jnp.float32),   # running sum of log(neg)
            pltpu.VMEM((1, n), jnp.float32),   # running sum of relu(dmax-neg)
        ],
        compiler_params=pltpu.CompilerParams(
            dimension_semantics=("arbitrary",),   # axis carries accumulators
            vmem_limit_bytes=32 * 1024 * 1024,
        ),
    )(pos, neg)
    return out[0, 0]


if __name__ == "__main__":
    def ref_loss(pos_t, neg_t, qs):
        # Pure-JAX reference mirroring the PyTorch forward exactly.
        pos = pos_t.reshape(qs, -1)
        neg = neg_t.reshape(qs, -1)
        d_plus_max = jnp.max(pos, axis=-1, keepdims=True)
        psi = jnp.mean(jnp.maximum(d_plus_max - neg, 0.0))
        phi = -(jnp.mean(jnp.log(1.0 - pos_t)) + jnp.mean(jnp.log(neg_t)))
        return phi + psi

    # Similarities must lie in (0, 1) so log(1 - pos) / log(neg) are finite.
    key = jax.random.PRNGKey(0)
    kp, kn = jax.random.split(key)

    # Case 1: single grid step (Q = 8, 16x16 patches per query).
    q1 = 8
    pos1 = jax.random.uniform(kp, (q1, 16, 16), jnp.float32, 0.05, 0.95)
    neg1 = jax.random.uniform(kn, (q1, 16, 16), jnp.float32, 0.05, 0.95)
    loss1 = triplet_loss(pos1, neg1, q1)
    jax.block_until_ready(loss1)
    ref1 = ref_loss(pos1, neg1, q1)
    assert jnp.allclose(loss1, ref1, rtol=1e-5, atol=1e-5), (loss1, ref1)

    # Case 2: multi-step accumulation + Q padding (Q=20 -> padded 24, TQ=8).
    kp2, kn2 = jax.random.split(jax.random.PRNGKey(1))
    q2 = 20
    pos2 = jax.random.uniform(kp2, (q2, 16, 16), jnp.float32, 0.05, 0.95)
    neg2 = jax.random.uniform(kn2, (q2, 16, 16), jnp.float32, 0.05, 0.95)
    loss2 = triplet_loss(pos2, neg2, q2, tq=8)
    jax.block_until_ready(loss2)
    ref2 = ref_loss(pos2, neg2, q2)
    assert jnp.allclose(loss2, ref2, rtol=1e-5, atol=1e-5), (loss2, ref2)

    print("KERNEL_OK")
</pallas_src>

<mosaic_0001>
module attributes {stable_mosaic.version = 11 : i64} {
  func.func @_triplet_loss_kernel(%arg0: i32, %arg1: memref<8x256xf32, #tpu.memory_space<vmem>>, %arg2: memref<8x256xf32, #tpu.memory_space<vmem>>, %arg3: memref<1x1xf32, #tpu.memory_space<smem>>, %arg4: memref<1x256xf32, #tpu.memory_space<vmem>>, %arg5: memref<1x256xf32, #tpu.memory_space<vmem>>, %arg6: memref<1x256xf32, #tpu.memory_space<vmem>>) attributes {dimension_semantics = [#tpu.dimension_semantics<arbitrary>], iteration_bounds = array<i64: 1>, scalar_prefetch = 0 : i64, scratch_operands = 3 : i64, tpu.core_type = #tpu.core_type<tc>, window_params = [{transform_indices = @transform_0, window_bounds = array<i64: 8, 256>}, {transform_indices = @transform_1, window_bounds = array<i64: 8, 256>}, {transform_indices = @transform_2, window_bounds = array<i64: 1, 1>}]} {
    %c0_i32 = arith.constant 0 : i32
    %0 = arith.cmpi eq, %arg0, %c0_i32 : i32
    %1 = arith.extui %0 : i1 to i32
    %c0_i32_0 = arith.constant 0 : i32
    %2 = arith.cmpi ne, %1, %c0_i32_0 : i32
    scf.if %2 {
      %cst_23 = arith.constant 0.000000e+00 : f32
      %33 = vector.broadcast %cst_23 : f32 to vector<1x256xf32>
      %c0_24 = arith.constant 0 : index
      %c0_25 = arith.constant 0 : index
      %34 = vector.load %arg4[%c0_24, %c0_25] : memref<1x256xf32, #tpu.memory_space<vmem>>, vector<1x256xf32>
      tpu.vector_store %arg4[%c0_24, %c0_25], %33 {strides = array<i32>} : memref<1x256xf32, #tpu.memory_space<vmem>>, vector<1x256xf32>,
      %cst_26 = arith.constant 0.000000e+00 : f32
      %35 = vector.broadcast %cst_26 : f32 to vector<1x256xf32>
      %c0_27 = arith.constant 0 : index
      %c0_28 = arith.constant 0 : index
      %36 = vector.load %arg5[%c0_27, %c0_28] : memref<1x256xf32, #tpu.memory_space<vmem>>, vector<1x256xf32>
      tpu.vector_store %arg5[%c0_27, %c0_28], %35 {strides = array<i32>} : memref<1x256xf32, #tpu.memory_space<vmem>>, vector<1x256xf32>,
      %cst_29 = arith.constant 0.000000e+00 : f32
      %37 = vector.broadcast %cst_29 : f32 to vector<1x256xf32>
      %c0_30 = arith.constant 0 : index
      %c0_31 = arith.constant 0 : index
      %38 = vector.load %arg6[%c0_30, %c0_31] : memref<1x256xf32, #tpu.memory_space<vmem>>, vector<1x256xf32>
      tpu.vector_store %arg6[%c0_30, %c0_31], %37 {strides = array<i32>} : memref<1x256xf32, #tpu.memory_space<vmem>>, vector<1x256xf32>,
    } else {
    }
    %c0 = arith.constant 0 : index
    %c0_1 = arith.constant 0 : index
    %3 = vector.load %arg1[%c0, %c0_1] : memref<8x256xf32, #tpu.memory_space<vmem>>, vector<8x256xf32>
    %c0_2 = arith.constant 0 : index
    %c0_3 = arith.constant 0 : index
    %4 = vector.load %arg2[%c0_2, %c0_3] : memref<8x256xf32, #tpu.memory_space<vmem>>, vector<8x256xf32>
    %cst = arith.constant dense<0xFF800000> : vector<8xf32>
    %5 = vector.multi_reduction <maximumf>, %3, %cst [1] : vector<8x256xf32> to vector<8xf32>
    %6 = vector.shape_cast %5 : vector<8xf32> to vector<8x1xf32>
    %c0_4 = arith.constant 0 : index
    %c0_5 = arith.constant 0 : index
    %7 = vector.load %arg6[%c0_4, %c0_5] : memref<1x256xf32, #tpu.memory_space<vmem>>, vector<1x256xf32>
    %8 = vector.broadcast %6 : vector<8x1xf32> to vector<8x256xf32>
    %9 = arith.subf %8, %4 : vector<8x256xf32>
    %cst_6 = arith.constant 0.000000e+00 : f32
    %10 = vector.broadcast %cst_6 : f32 to vector<8x256xf32>
    %11 = arith.maximumf %9, %10 : vector<8x256xf32>
    %cst_7 = arith.constant dense<0.000000e+00> : vector<256xf32>
    %12 = vector.multi_reduction <add>, %11, %cst_7 [0] : vector<8x256xf32> to vector<256xf32>
    %13 = vector.shape_cast %12 : vector<256xf32> to vector<1x256xf32>
    %14 = arith.addf %7, %13 : vector<1x256xf32>
    %c0_8 = arith.constant 0 : index
    %c0_9 = arith.constant 0 : index
    %15 = vector.load %arg6[%c0_8, %c0_9] : memref<1x256xf32, #tpu.memory_space<vmem>>, vector<1x256xf32>
    tpu.vector_store %arg6[%c0_8, %c0_9], %14 {strides = array<i32>} : memref<1x256xf32, #tpu.memory_space<vmem>>, vector<1x256xf32>,
    %c0_10 = arith.constant 0 : index
    %c0_11 = arith.constant 0 : index
    %16 = vector.load %arg4[%c0_10, %c0_11] : memref<1x256xf32, #tpu.memory_space<vmem>>, vector<1x256xf32>
    %cst_12 = arith.constant 1.000000e+00 : f32
    %17 = vector.broadcast %cst_12 : f32 to vector<8x256xf32>
    %18 = arith.subf %17, %3 : vector<8x256xf32>
    %19 = math.log %18 : vector<8x256xf32>
    %cst_13 = arith.constant dense<0.000000e+00> : vector<256xf32>
    %20 = vector.multi_reduction <add>, %19, %cst_13 [0] : vector<8x256xf32> to vector<256xf32>
    %21 = vector.shape_cast %20 : vector<256xf32> to vector<1x256xf32>
    %22 = arith.addf %16, %21 : vector<1x256xf32>
    %c0_14 = arith.constant 0 : index
    %c0_15 = arith.constant 0 : index
    %23 = vector.load %arg4[%c0_14, %c0_15] : memref<1x256xf32, #tpu.memory_space<vmem>>, vector<1x256xf32>
    tpu.vector_store %arg4[%c0_14, %c0_15], %22 {strides = array<i32>} : memref<1x256xf32, #tpu.memory_space<vmem>>, vector<1x256xf32>,
    %c0_16 = arith.constant 0 : index
    %c0_17 = arith.constant 0 : index
    %24 = vector.load %arg5[%c0_16, %c0_17] : memref<1x256xf32, #tpu.memory_space<vmem>>, vector<1x256xf32>
    %25 = math.log %4 : vector<8x256xf32>
    %cst_18 = arith.constant dense<0.000000e+00> : vector<256xf32>
    %26 = vector.multi_reduction <add>, %25, %cst_18 [0] : vector<8x256xf32> to vector<256xf32>
    %27 = vector.shape_cast %26 : vector<256xf32> to vector<1x256xf32>
    %28 = arith.addf %24, %27 : vector<1x256xf32>
    %c0_19 = arith.constant 0 : index
    %c0_20 = arith.constant 0 : index
    %29 = vector.load %arg5[%c0_19, %c0_20] : memref<1x256xf32, #tpu.memory_space<vmem>>, vector<1x256xf32>
    tpu.vector_store %arg5[%c0_19, %c0_20], %28 {strides = array<i32>} : memref<1x256xf32, #tpu.memory_space<vmem>>, vector<1x256xf32>,
    %c0_i32_21 = arith.constant 0 : i32
    %30 = arith.cmpi eq, %arg0, %c0_i32_21 : i32
    %31 = arith.extui %30 : i1 to i32
    %c0_i32_22 = arith.constant 0 : i32
    %32 = arith.cmpi ne, %31, %c0_i32_22 : i32
    scf.if %32 {
      %c0_23 = arith.constant 0 : index
      %c0_24 = arith.constant 0 : index
      %33 = vector.load %arg6[%c0_23, %c0_24] : memref<1x256xf32, #tpu.memory_space<vmem>>, vector<1x256xf32>
      %34 = vector.shape_cast %33 : vector<1x256xf32> to vector<1x1x256xf32>
      %cst_25 = arith.constant dense<0.000000e+00> : vector<1xf32>
      %35 = vector.multi_reduction <add>, %34, %cst_25 [1, 2] : vector<1x1x256xf32> to vector<1xf32>
      %36 = vector.shape_cast %35 : vector<1xf32> to vector<1x1x1xf32>
      %37 = vector.extract %36[0, 0, 0] : f32 from vector<1x1x1xf32>
      %cst_26 = arith.constant 4.8828125E-4 : f32
      %38 = arith.mulf %37, %cst_26 : f32
      %c0_27 = arith.constant 0 : index
      %c0_28 = arith.constant 0 : index
      %39 = vector.load %arg4[%c0_27, %c0_28] : memref<1x256xf32, #tpu.memory_space<vmem>>, vector<1x256xf32>
      %40 = vector.shape_cast %39 : vector<1x256xf32> to vector<1x1x256xf32>
      %cst_29 = arith.constant dense<0.000000e+00> : vector<1xf32>
      %41 = vector.multi_reduction <add>, %40, %cst_29 [1, 2] : vector<1x1x256xf32> to vector<1xf32>
      %42 = vector.shape_cast %41 : vector<1xf32> to vector<1x1x1xf32>
      %43 = vector.extract %42[0, 0, 0] : f32 from vector<1x1x1xf32>
      %cst_30 = arith.constant 4.8828125E-4 : f32
      %44 = arith.mulf %43, %cst_30 : f32
      %c0_31 = arith.constant 0 : index
      %c0_32 = arith.constant 0 : index
      %45 = vector.load %arg5[%c0_31, %c0_32] : memref<1x256xf32, #tpu.memory_space<vmem>>, vector<1x256xf32>
      %46 = vector.shape_cast %45 : vector<1x256xf32> to vector<1x1x256xf32>
      %cst_33 = arith.constant dense<0.000000e+00> : vector<1xf32>
      %47 = vector.multi_reduction <add>, %46, %cst_33 [1, 2] : vector<1x1x256xf32> to vector<1xf32>
      %48 = vector.shape_cast %47 : vector<1xf32> to vector<1x1x1xf32>
      %49 = vector.extract %48[0, 0, 0] : f32 from vector<1x1x1xf32>
      %cst_34 = arith.constant 4.8828125E-4 : f32
      %50 = arith.mulf %49, %cst_34 : f32
      %51 = arith.addf %44, %50 : f32
      %cst_35 = arith.constant 0.000000e+00 : f32
      %52 = arith.subf %cst_35, %51 : f32
      %53 = arith.addf %52, %38 : f32
      %c0_36 = arith.constant 0 : index
      %c0_37 = arith.constant 0 : index
      %54 = memref.load %arg3[%c0_36, %c0_37] : memref<1x1xf32, #tpu.memory_space<smem>>
      memref.store %53, %arg3[%c0_36, %c0_37] : memref<1x1xf32, #tpu.memory_space<smem>>
    } else {
    }
    return
  }
  func.func @transform_0(%arg0: i32) -> (i32, i32) {
    %c0_i32 = arith.constant 0 : i32
    %c0_i32_0 = arith.constant 0 : i32
    return %arg0, %c0_i32 : i32, i32
  }
  func.func @transform_1(%arg0: i32) -> (i32, i32) {
    %c0_i32 = arith.constant 0 : i32
    %c0_i32_0 = arith.constant 0 : i32
    return %arg0, %c0_i32 : i32, i32
  }
  func.func @transform_2(%arg0: i32) -> (i32, i32) {
    %c0_i32 = arith.constant 0 : i32
    %c0_i32_0 = arith.constant 0 : i32
    %c0_i32_1 = arith.constant 0 : i32
    return %c0_i32, %c0_i32_0 : i32, i32
  }
}

</mosaic_0001>

<llo_original>
// kernel: tpu_custom_call.1
$region0: #{tpu_custom_call.1}
  #allocation0 [shape = 'u32[]', space=smem, size = 0x4, offset = 0x4, fixed_abs, tag = 'smem constant byte address 0x4 - core index']
  #allocation1 [shape = 'u32[72,128]{1,0:T(1,128)}', space=vmem, size = 0x9000, scoped, tag = 'internal scratch']
  #allocation2 [shape = 'f32[1,256]{1,0:T(1,128)}', space=vmem, size = 0x400, scoped, tag = 'scratch operand']
  #allocation3 [shape = 'f32[1,256]{1,0:T(1,128)}', space=vmem, size = 0x400, scoped, tag = 'scratch operand']
  #allocation4 [shape = 'f32[1,256]{1,0:T(1,128)}', space=vmem, size = 0x400, scoped, tag = 'scratch operand']
  %s0 = inlined_call_operand.hbm [shape: f32[8,256], index: 0, kind: input, shape index: {}]
  %s1 = inlined_call_operand.hbm [shape: f32[8,256], index: 1, kind: input, shape index: {}]
  %s2 = inlined_call_operand.hbm [shape: f32[1,1], index: 2, kind: output, shape index: {}]
  %s3 = sld [smem:[#allocation0]]
  $region34: #{tpu_custom_call.1} parent=0
    _
  %s5 = ssub.s32 1, %s3
  %s6 = scalar_select 0, %s5, %s3
  $region1: #{tpu_custom_call.1} parent=0
    #allocation5 [shape = 'u8[8192]{0}', space=vmem, size = 0x2000, scoped, tag = 'input window, operand 0, single buffered']
    #allocation6 [shape = 's32[1]{0}', space=sflag, size = 0x4, scoped, tag = 'scoped memory for tpu_custom_call.1']
    #allocation7 [shape = 's32[1]{0}', space=sflag, size = 0x4, scoped, tag = 'scoped memory for tpu_custom_call.1']
    #allocation8 [shape = 'u8[8192]{0}', space=vmem, size = 0x2000, scoped, tag = 'input window, operand 1, single buffered']
    #allocation9 [shape = 's32[1]{0}', space=sflag, size = 0x4, scoped, tag = 'scoped memory for tpu_custom_call.1']
    #allocation10 [shape = 'u8[512]{0}', space=smem, size = 0x200, scoped, tag = 'output window, operand 0, single buffered']
    %7 = vsyncpa [#allocation6], 0
    %8 = vsyncpa [#allocation9], 0
    %9 = vsyncpa [#allocation7], 0
    // Predicated region
    $region2: #{tpu_custom_call.1} parent=1 // pred_check
      _
    $region3: #{tpu_custom_call.1} parent=1 // pred_check_branch
      %11 = sbr.rel (0) target = $region5
    $region4: #{tpu_custom_call.1} parent=1 // pred_region
      %13 = vsyncadd [#allocation6], 0
      %s15 = sshll.u32 %s0, 4
      %s16 = int_to_ptr.hbm [resolvable:$true] %s15
      %s17 = sshll.u32 [#allocation5], 4
      %s18 = int_to_ptr.vmem [resolvable:$true] %s17
      %20 = dma.hbm_to_vmem [thread:$0]  %s16, 256, %s18, [#allocation6]
    $region5: #{tpu_custom_call.1} parent=1 // pred_fallthru
      _
    // Predicated region
    $region6: #{tpu_custom_call.1} parent=1 // pred_check
      _
    $region7: #{tpu_custom_call.1} parent=1 // pred_check_branch
      %22 = sbr.rel (0) target = $region9
    $region8: #{tpu_custom_call.1} parent=1 // pred_region
      %24 = vsyncadd [#allocation9], 0
      %s26 = sshll.u32 %s1, 4
      %s27 = int_to_ptr.hbm [resolvable:$true] %s26
      %s28 = sshll.u32 [#allocation8], 4
      %s29 = int_to_ptr.vmem [resolvable:$true] %s28
      %31 = dma.hbm_to_vmem [thread:$0]  %s27, 256, %s29, [#allocation9]
    $region9: #{tpu_custom_call.1} parent=1 // pred_fallthru
      _
    // Predicated region
    $region10: #{tpu_custom_call.1} parent=1 // pred_check
      _
    $region11: #{tpu_custom_call.1} parent=1 // pred_check_branch
      %33 = sbr.rel (0) target = $region13
    $region12: #{tpu_custom_call.1} parent=1 // pred_region
      %35 = dma.done [#allocation6], 256
    $region13: #{tpu_custom_call.1} parent=1 // pred_fallthru
      _
    // Predicated region
    $region14: #{tpu_custom_call.1} parent=1 // pred_check
      _
    $region15: #{tpu_custom_call.1} parent=1 // pred_check_branch
      %37 = sbr.rel (0) target = $region17
    $region16: #{tpu_custom_call.1} parent=1 // pred_region
      %39 = dma.done [#allocation9], 256
    $region17: #{tpu_custom_call.1} parent=1 // pred_fallthru
      _
    %p40 = scmp.eq.s32.totalorder 0, 0
    // Predicated region
    $region18: #{tpu_custom_call.1} parent=1 // pred_check
      %p41 = pneg %p40
    $region19: #{tpu_custom_call.1} parent=1 // pred_check_branch
      %43 = sbr.rel (%p41) target = $region21
    $region20: #{tpu_custom_call.1} parent=1 // pred_region
      %v44 = vlaneseq
      %vm45 = vcmp.ge.s32.totalorder %v44, 0
      %vm46 = vcmp.lt.s32.totalorder %v44, 256
      %vm47 = vmand %vm45, %vm46
      %48 = vst.msk [vmem:[#allocation2] sm:$0x3] %vm47, 0.0
      %49 = vst.msk [vmem:[#allocation3] sm:$0x3] %vm47, 0.0
      %50 = vst.msk [vmem:[#allocation4] sm:$0x3] %vm47, 0.0
    $region21: #{tpu_custom_call.1} parent=1 // pred_fallthru
      _
    %v51 = vld [vmem:[#allocation5] sm:$0xff]
    %v52 = vld [vmem:[#allocation5 + $0x8] sm:$0xff]
    %v53 = vld [vmem:[#allocation8] sm:$0xff]
    %v54 = vld [vmem:[#allocation8 + $0x8] sm:$0xff]
    %v55 = vmax.f32 %v51, %v52
    %56 = vmax.xlane.f32.xlu0 %v55
    %v57 = vpop.xlane.xlu0 %56
    %v58 = vld [vmem:[#allocation4] sm:$0x3]
    %v59 = vsub.f32 %v57, %v53
    %v60 = vsub.f32 %v57, %v54
    %v61 = vmax.f32 %v59, 0.0
    %v62 = vmax.f32 %v60, 0.0
    %v63 = vrot.slane %v61, 4
    %v64 = vadd.f32 %v61, %v63
    %v65 = vrot.slane %v64, 2
    %v66 = vadd.f32 %v64, %v65
    %v67 = vrot.slane %v66, 1
    %v68 = vadd.f32 %v66, %v67
    %v69 = vrot.slane %v62, 4
    %v70 = vadd.f32 %v62, %v69
    %v71 = vrot.slane %v70, 2
    %v72 = vadd.f32 %v70, %v71
    %v73 = vrot.slane %v72, 1
    %v74 = vadd.f32 %v72, %v73
    %v77 = vrot.slane %v74, 7
    %vm78 = vcmask 1040384
    %v79 = vsel %vm78, %v68, %v77
    %v81 = vadd.f32 %v58, %v79
    %v82 = vlaneseq
    %vm83 = vcmp.ge.s32.totalorder %v82, 0
    %vm84 = vcmp.lt.s32.totalorder %v82, 256
    %vm85 = vmand %vm83, %vm84
    %86 = vst.msk [vmem:[#allocation4] sm:$0x3] %vm85, %v81
    %v87 = vld [vmem:[#allocation2] sm:$0x3]
    %v88 = vsub.f32 1.0, %v51
    %v89 = vsub.f32 1.0, %v52
    %v90 = vlog2.pop %v88
    %v91 = vmul.f32 %v90, 0.6931472
    %v92 = vlog2.pop %v89
    %v93 = vmul.f32 %v92, 0.6931472
    %v94 = vrot.slane %v91, 4
    %v95 = vadd.f32 %v91, %v94
    %v96 = vrot.slane %v95, 2
    %v97 = vadd.f32 %v95, %v96
    %v98 = vrot.slane %v97, 1
    %v99 = vadd.f32 %v97, %v98
    %v100 = vrot.slane %v93, 4
    %v101 = vadd.f32 %v93, %v100
    %v102 = vrot.slane %v101, 2
    %v103 = vadd.f32 %v101, %v102
    %v104 = vrot.slane %v103, 1
    %v105 = vadd.f32 %v103, %v104
    %v108 = vrot.slane %v105, 7
    %v109 = vsel %vm78, %v99, %v108
    %v111 = vadd.f32 %v87, %v109
    %112 = vst.msk [vmem:[#allocation2] sm:$0x3] %vm85, %v111
    %v113 = vld [vmem:[#allocation3] sm:$0x3]
    %v114 = vlog2.pop %v53
    %v115 = vmul.f32 %v114, 0.6931472
    %v116 = vlog2.pop %v54
    %v117 = vmul.f32 %v116, 0.6931472
    %v118 = vrot.slane %v115, 4
    %v119 = vadd.f32 %v115, %v118
    %v120 = vrot.slane %v119, 2
    %v121 = vadd.f32 %v119, %v120
    %v122 = vrot.slane %v121, 1
    %v123 = vadd.f32 %v121, %v122
    %v124 = vrot.slane %v117, 4
    %v125 = vadd.f32 %v117, %v124
    %v126 = vrot.slane %v125, 2
    %v127 = vadd.f32 %v125, %v126
    %v128 = vrot.slane %v127, 1
    %v129 = vadd.f32 %v127, %v128
    %v132 = vrot.slane %v129, 7
    %v133 = vsel %vm78, %v123, %v132
    %v135 = vadd.f32 %v113, %v133
    %136 = vst.msk [vmem:[#allocation3] sm:$0x3] %vm85, %v135
    // Predicated region
    $region22: #{tpu_custom_call.1} parent=1 // pred_check
      %p137 = pneg %p40
    $region23: #{tpu_custom_call.1} parent=1 // pred_check_branch
      %139 = sbr.rel (%p137) target = $region25
    $region24: #{tpu_custom_call.1} parent=1 // pred_region
      %v140 = vld [vmem:[#allocation4] sm:$0x3]
      %v142 = vperm.slane %v140, 0
      %v143 = vperm.slane %v140, 1
      %v146 = vsel %vm78, %v142, 0.0
      %v147 = vsel %vm78, %v143, 0.0
      %v148 = vadd.f32 %v146, %v147
      %149 = vadd.xlane.f32.xlu0 %v148
      %v150 = vpop.xlane.xlu0 %149
      %v151 = vrot.slane %v150, 4
      %v152 = vadd.f32 %v150, %v151
      %v153 = vrot.slane %v152, 2
      %v154 = vadd.f32 %v152, %v153
      %v155 = vrot.slane %v154, 1
      %v156 = vadd.f32 %v154, %v155
      %s157 = vtos %v156
      %s158 = smul.f32 %s157, 0.00048828125
      %v159 = vld [vmem:[#allocation2] sm:$0x3]
      %v161 = vperm.slane %v159, 0
      %v162 = vperm.slane %v159, 1
      %v165 = vsel %vm78, %v161, 0.0
      %v166 = vsel %vm78, %v162, 0.0
      %v167 = vadd.f32 %v165, %v166
      %168 = vadd.xlane.f32.xlu0 %v167
      %v169 = vpop.xlane.xlu0 %168
      %v170 = vrot.slane %v169, 4
      %v171 = vadd.f32 %v169, %v170
      %v172 = vrot.slane %v171, 2
      %v173 = vadd.f32 %v171, %v172
      %v174 = vrot.slane %v173, 1
      %v175 = vadd.f32 %v173, %v174
      %s176 = vtos %v175
      %s177 = smul.f32 %s176, 0.00048828125
      %v178 = vld [vmem:[#allocation3] sm:$0x3]
      %v180 = vperm.slane %v178, 0
      %v181 = vperm.slane %v178, 1
      %v184 = vsel %vm78, %v180, 0.0
      %v185 = vsel %vm78, %v181, 0.0
      %v186 = vadd.f32 %v184, %v185
      %187 = vadd.xlane.f32.xlu0 %v186
      %v188 = vpop.xlane.xlu0 %187
      %v189 = vrot.slane %v188, 4
      %v190 = vadd.f32 %v188, %v189
      %v191 = vrot.slane %v190, 2
      %v192 = vadd.f32 %v190, %v191
      %v193 = vrot.slane %v192, 1
      %v194 = vadd.f32 %v192, %v193
      %s195 = vtos %v194
      %s196 = smul.f32 %s195, 0.00048828125
      %s197 = sadd.f32 %s177, %s196
      %s198 = ssub.f32 0.0, %s197
      %s199 = sadd.f32 %s198, %s158
      %s200 = scalar_lea.smem [#allocation10], 0
      %201 = sst [smem:[%s200]] %s199
    $region25: #{tpu_custom_call.1} parent=1 // pred_fallthru
      _
    // Predicated region
    $region26: #{tpu_custom_call.1} parent=1 // pred_check
      _
    $region27: #{tpu_custom_call.1} parent=1 // pred_check_branch
      %203 = sbr.rel (0) target = $region29
    $region28: #{tpu_custom_call.1} parent=1 // pred_region
      %205 = vsyncadd [#allocation7], 0
      %s207 = sshll.u32 %s2, 4
      %s208 = int_to_ptr.hbm [resolvable:$true] %s207
      %210 = dma.smem_to_hbm [#allocation10], 16, %s208, [#allocation7]
    $region29: #{tpu_custom_call.1} parent=1 // pred_fallthru
      _
    // Predicated region
    $region30: #{tpu_custom_call.1} parent=1 // pred_check
      _
    $region31: #{tpu_custom_call.1} parent=1 // pred_check_branch
      %212 = sbr.rel (0) target = $region33
    $region32: #{tpu_custom_call.1} parent=1 // pred_region
      %214 = dma.done [#allocation7], 16
    $region33: #{tpu_custom_call.1} parent=1 // pred_fallthru
      _
    %215 = sfence
    %216 = vsyncpa [#allocation6], 1
    %217 = vsyncpa [#allocation9], 1
    %218 = vsyncpa [#allocation7], 1

</llo_original>
